<compile_context>
chip_gen: v6e
topology: v6e:2x2x1
jax: 0.10.0
libtpu: 0.0.40
codegen_flags: <defaults>
</compile_context>

<pallas_src>
import functools

import jax
import jax.numpy as jnp
from jax.experimental import pallas as pl
from jax.experimental.pallas import tpu as pltpu


def wave_block_kernel(x_ref, w_ref, b_ref, out_ref, *, dilations, seq_len):
    """One batch-group per grid step; channels on sublanes, (batch*time) on lanes.

    x_ref  : (Cin, T)            input tile, T = nb * seq_len lanes
    w_ref  : (C*(1+3R), 3C)      packed weights: [w0 | per-rate (wfg ; wc)], bf16 or f32
    b_ref  : (C*(1+3R), 1)       packed biases (f32), same row layout as w_ref
    out_ref: (C, T)
    """
    Cin, T = x_ref.shape
    C = out_ref.shape[0]
    L = seq_len
    mm_dtype = w_ref.dtype            # matmul operand dtype (bf16 on the perf path)

    x_in = x_ref[...].astype(mm_dtype)                       # (Cin, T)

    # convs[0]: 1x1 conv == channel matmul, (C, Cin) @ (Cin, T), f32 accumulate.
    w0 = w_ref[0:C, 0:Cin]
    b0 = b_ref[0:C]
    h = jnp.dot(w0, x_in, preferred_element_type=jnp.float32) + b0
    res = h

    # Loop-invariant per-sample lane index (hoisted out of the unrolled rate loop).
    # lane % L makes the roll-based taps exact across folded batch boundaries.
    lane = jax.lax.broadcasted_iota(jnp.int32, (C, T), 1) % L

    for i, d in enumerate(dilations):                         # static unroll over rates
        base = C + 3 * C * i
        wfg = w_ref[base:base + 2 * C, :]                     # (2C, 3C)  [filter; gate]
        bfg = b_ref[base:base + 2 * C]                        # (2C, 1)
        wc = w_ref[base + 2 * C:base + 3 * C, 0:C]            # (C, C)    1x1 conv
        bc = b_ref[base + 2 * C:base + 3 * C]                 # (C, 1)

        # x(t-d) / x(t+d) with zero padding: XLU lane rotate + one VPU select each,
        # masked per-sample so nothing leaks between folded batch elements.
        x_m = jnp.where(lane >= d, pltpu.roll(h, d, axis=1), 0.0)
        x_p = jnp.where(lane < L - d, pltpu.roll(h, T - d, axis=1), 0.0)

        # (3C, T) stacked taps; sublane-aligned concat (C is a multiple of 8).
        xcat = jnp.concatenate([x_m, h, x_p], axis=0).astype(mm_dtype)

        # Fused filter+gate: single (2C, 3C) @ (3C, T) MXU matmul + stacked bias.
        fg = jnp.dot(wfg, xcat, preferred_element_type=jnp.float32) + bfg
        z = jnp.tanh(fg[:C]) * jax.nn.sigmoid(fg[C:])         # f32 gated activation

        # convs[i+1]: 1x1 conv + residual accumulate (f32).
        h = jnp.dot(wc, z.astype(mm_dtype), preferred_element_type=jnp.float32) + bc
        res = res + h

    out_ref[...] = res


def wave_block_pallas(x_ncl, kp, dilations, *, use_bf16=True, lane_cap=2048):
    """x_ncl: (N, Cin, L) float32, PyTorch layout.  Returns (N, Cout, L) float32."""
    N, Cin, L = x_ncl.shape
    R = len(dilations)
    W = kp["W_bf16"] if use_bf16 else kp["W_f32"]
    B = kp["B"]
    C = B.shape[0] // (1 + 3 * R)

    assert C % 8 == 0, "out_channels must be a multiple of 8 (sublane alignment)"
    assert L % 128 == 0, "sequence length must be a multiple of 128 lanes"
    assert all(0 < d < L for d in dilations), "dilation must be < sequence length"

    # Fold batch into the lane axis: (N, Cin, L) -> (Cin, N*L).  Cheap layout plumbing.
    x_flat = jnp.transpose(x_ncl, (1, 0, 2)).reshape(Cin, N * L)

    # Batches per grid step: cap the lane tile at ~lane_cap lanes, but keep at least
    # 2 parallel grid steps when N allows so both v7x TensorCores get work.
    nb = max(1, min(N, lane_cap // L))
    if N >= 2:
        nb = max(1, min(nb, N // 2))
    while N % nb:
        nb -= 1
    grid = N // nb
    T = nb * L

    kernel = functools.partial(
        wave_block_kernel, dilations=tuple(dilations), seq_len=L)

    out_flat = pl.pallas_call(
        kernel,
        out_shape=jax.ShapeDtypeStruct((C, N * L), jnp.float32),
        grid=(grid,),
        in_specs=[
            pl.BlockSpec((Cin, T), lambda g: (0, g)),         # input lane tile
            pl.BlockSpec(W.shape, lambda g: (0, 0)),          # packed weights (resident)
            pl.BlockSpec(B.shape, lambda g: (0, 0)),          # packed biases  (resident)
        ],
        out_specs=pl.BlockSpec((C, T), lambda g: (0, g)),     # lane-dense f32 output
        compiler_params=pltpu.CompilerParams(
            dimension_semantics=("parallel",)),
    )(x_flat, W, B)

    # (C, N*L) -> (N, C, L), back to PyTorch layout.
    return out_flat.reshape(C, N, L).transpose(1, 0, 2)


# ----------------------------------------------------------------------------
# Parameter construction (deterministic, synthetic) + pure-JAX reference
# ----------------------------------------------------------------------------
def init_params(key, in_channels, out_channels, num_rates):
    """Build PyTorch-layout weights plus the packed kernel-layout slabs."""
    R, C, Cin = num_rates, out_channels, in_channels
    n_keys = 4 + 6 * R
    keys = jax.random.split(key, n_keys)
    ki = iter(range(n_keys))

    def rnd(shape):
        return (0.1 * jax.random.normal(keys[next(ki)], shape)).astype(jnp.float32)

    tp = {}  # torch-layout params (for the lax.conv reference)
    tp["w0"] = rnd((C, Cin, 1))
    tp["b0"] = rnd((C,))
    tp["wf"] = jnp.stack([rnd((C, C, 3)) for _ in range(R)])
    tp["bf"] = jnp.stack([rnd((C,)) for _ in range(R)])
    tp["wg"] = jnp.stack([rnd((C, C, 3)) for _ in range(R)])
    tp["bg"] = jnp.stack([rnd((C,)) for _ in range(R)])
    tp["wc"] = jnp.stack([rnd((C, C, 1)) for _ in range(R)])
    tp["bc"] = jnp.stack([rnd((C,)) for _ in range(R)])

    def pack_taps(w):
        # (R, C, C, 3) -> (R, C, 3C), column blocks = [tap-d | tap0 | tap+d]
        return jnp.concatenate([w[..., 0], w[..., 1], w[..., 2]], axis=-1)

    # One flat weight slab and one flat bias slab (fewer operands -> fewer DMAs).
    # Row layout: [w0 (C rows)] then per rate [wfg (2C rows) ; wc (C rows)].
    rows = C * (1 + 3 * R)
    W = jnp.zeros((rows, 3 * C), jnp.float32)
    Bb = jnp.zeros((rows, 1), jnp.float32)
    W = W.at[0:C, 0:Cin].set(tp["w0"][:, :, 0])
    Bb = Bb.at[0:C, 0].set(tp["b0"])
    wfg = jnp.concatenate([pack_taps(tp["wf"]), pack_taps(tp["wg"])], axis=1)  # (R,2C,3C)
    bfg = jnp.concatenate([tp["bf"], tp["bg"]], axis=-1)                        # (R,2C)
    for i in range(R):
        base = C + 3 * C * i
        W = W.at[base:base + 2 * C, :].set(wfg[i])
        W = W.at[base + 2 * C:base + 3 * C, 0:C].set(tp["wc"][i, :, :, 0])
        Bb = Bb.at[base:base + 2 * C, 0].set(bfg[i])
        Bb = Bb.at[base + 2 * C:base + 3 * C, 0].set(tp["bc"][i])

    kp = {"W_f32": W, "W_bf16": W.astype(jnp.bfloat16), "B": Bb}
    return tp, kp


def wave_block_ref(x, tp, dilations):
    """Pure-JAX reference mirroring the PyTorch forward (NCL layout)."""
    def conv1d(x, w, b, pad=0, dil=1):
        y = jax.lax.conv_general_dilated(
            x, w, window_strides=(1,), padding=[(pad, pad)],
            rhs_dilation=(dil,), dimension_numbers=("NCH", "OIH", "NCH"))
        return y + b[None, :, None]

    x = conv1d(x, tp["w0"], tp["b0"])
    res = x
    for i, d in enumerate(dilations):
        f = conv1d(x, tp["wf"][i], tp["bf"][i], pad=d, dil=d)
        g = conv1d(x, tp["wg"][i], tp["bg"][i], pad=d, dil=d)
        x = jnp.tanh(f) * jax.nn.sigmoid(g)
        x = conv1d(x, tp["wc"][i], tp["bc"][i])
        res = res + x
    return res


if __name__ == "__main__":
    # Wave_Block(in_channels=4, out_channels=16, dilation_rates=3)
    N, Cin, Cout, L = 4, 4, 16, 128
    num_rates = 3
    dilations = [2 ** i for i in range(num_rates)]

    key = jax.random.PRNGKey(0)
    pkey, xkey = jax.random.split(key)
    tparams, kparams = init_params(pkey, Cin, Cout, num_rates)

    x = jax.random.normal(xkey, (N, Cin, L), dtype=jnp.float32)     # PyTorch NCL input

    ref = jax.block_until_ready(wave_block_ref(x, tparams, dilations))

    # Strict f32 validation path (f32 matmul operands).
    out_f32 = jax.block_until_ready(
        wave_block_pallas(x, kparams, dilations, use_bf16=False))
    assert out_f32.shape == (N, Cout, L), out_f32.shape
    assert jnp.allclose(out_f32, ref, atol=1e-4, rtol=1e-4), \
        float(jnp.max(jnp.abs(out_f32 - ref)))

    # Default perf path: bf16 MXU operands, f32 accumulation / gating / residual.
    out_bf16 = jax.block_until_ready(
        wave_block_pallas(x, kparams, dilations, use_bf16=True))
    assert out_bf16.shape == (N, Cout, L), out_bf16.shape
    assert jnp.allclose(out_bf16, ref, atol=5e-2, rtol=5e-2), \
        float(jnp.max(jnp.abs(out_bf16 - ref)))

    print("KERNEL_OK")
</pallas_src>

<mosaic_0001>
module attributes {stable_mosaic.version = 11 : i64} {
  func.func @wave_block_kernel(%arg0: i32, %arg1: memref<4x256xf32, #tpu.memory_space<vmem>>, %arg2: memref<160x48xf32, #tpu.memory_space<vmem>>, %arg3: memref<160x1xf32, #tpu.memory_space<vmem>>, %arg4: memref<16x256xf32, #tpu.memory_space<vmem>>) attributes {dimension_semantics = [#tpu.dimension_semantics<parallel>], iteration_bounds = array<i64: 2>, scalar_prefetch = 0 : i64, scratch_operands = 0 : i64, tpu.core_type = #tpu.core_type<tc>, window_params = [{transform_indices = @transform_0, window_bounds = array<i64: 4, 256>}, {pipeline_mode = #tpu.pipeline_mode<synchronous>, transform_indices = @transform_1, window_bounds = array<i64: 160, 48>}, {pipeline_mode = #tpu.pipeline_mode<synchronous>, transform_indices = @transform_2, window_bounds = array<i64: 160, 1>}, {transform_indices = @transform_3, window_bounds = array<i64: 16, 256>}]} {
    %c0 = arith.constant 0 : index
    %c0_0 = arith.constant 0 : index
    %0 = vector.load %arg1[%c0, %c0_0] : memref<4x256xf32, #tpu.memory_space<vmem>>, vector<4x256xf32>
    %c0_1 = arith.constant 0 : index
    %c0_2 = arith.constant 0 : index
    %1 = vector.load %arg2[%c0_1, %c0_2] : memref<160x48xf32, #tpu.memory_space<vmem>>, vector<16x4xf32>
    %c0_3 = arith.constant 0 : index
    %c0_4 = arith.constant 0 : index
    %2 = vector.load %arg3[%c0_3, %c0_4] : memref<160x1xf32, #tpu.memory_space<vmem>>, vector<16x1xf32>
    %cst = arith.constant dense<0.000000e+00> : vector<16x256xf32>
    %3 = tpu.matmul %1, %0, %cst {dimension_numbers = #tpu.dot_dimension_numbers<[1], [0], [0], [1], [0, 0, 1, 1], [], []>} : vector<16x4xf32>, vector<4x256xf32>, vector<16x256xf32> -> vector<16x256xf32>
    %4 = vector.broadcast %2 : vector<16x1xf32> to vector<16x256xf32>
    %5 = arith.addf %3, %4 : vector<16x256xf32>
    %6 = tpu.iota {dimensions = array<i32: 1>} : vector<16x256xi32>
    %c128_i32 = arith.constant 128 : i32
    %c0_i32 = arith.constant 0 : i32
    %7 = arith.cmpi eq, %c128_i32, %c0_i32 : i32
    %c1_i32 = arith.constant 1 : i32
    %8 = arith.select %7, %c1_i32, %c128_i32 : i32
    %9 = vector.broadcast %8 : i32 to vector<16x256xi32>
    %10 = arith.remsi %6, %9 : vector<16x256xi32>
    %c0_i32_5 = arith.constant 0 : i32
    %11 = vector.broadcast %c0_i32_5 : i32 to vector<16x256xi32>
    %12 = arith.cmpi ne, %10, %11 : vector<16x256xi32>
    %c0_i32_6 = arith.constant 0 : i32
    %13 = vector.broadcast %c0_i32_6 : i32 to vector<16x256xi32>
    %14 = arith.cmpi slt, %10, %13 : vector<16x256xi32>
    %c0_i32_7 = arith.constant 0 : i32
    %15 = arith.cmpi slt, %8, %c0_i32_7 : i32
    %16 = vector.broadcast %15 : i1 to vector<16x256xi1>
    %17 = vector.broadcast %16 : vector<16x256xi1> to vector<16x256xi1>
    %18 = arith.xori %14, %17 : vector<16x256xi1>
    %19 = arith.andi %18, %12 : vector<16x256xi1>
    %20 = vector.broadcast %8 : i32 to vector<16x256xi32>
    %21 = arith.addi %10, %20 : vector<16x256xi32>
    %22 = arith.select %19, %21, %10 : vector<16x256xi1>, vector<16x256xi32>
    %c16 = arith.constant 16 : index
    %c0_8 = arith.constant 0 : index
    %23 = vector.load %arg2[%c16, %c0_8] : memref<160x48xf32, #tpu.memory_space<vmem>>, vector<32x48xf32>
    %c16_9 = arith.constant 16 : index
    %c0_10 = arith.constant 0 : index
    %24 = vector.load %arg3[%c16_9, %c0_10] : memref<160x1xf32, #tpu.memory_space<vmem>>, vector<32x1xf32>
    %c48 = arith.constant 48 : index
    %c0_11 = arith.constant 0 : index
    %25 = vector.load %arg2[%c48, %c0_11] : memref<160x48xf32, #tpu.memory_space<vmem>>, vector<16x16xf32>
    %c48_12 = arith.constant 48 : index
    %c0_13 = arith.constant 0 : index
    %26 = vector.load %arg3[%c48_12, %c0_13] : memref<160x1xf32, #tpu.memory_space<vmem>>, vector<16x1xf32>
    %c1_i32_14 = arith.constant 1 : i32
    %27 = vector.broadcast %c1_i32_14 : i32 to vector<16x256xi32>
    %28 = arith.cmpi sge, %22, %27 : vector<16x256xi32>
    %c1_i32_15 = arith.constant 1 : i32
    %29 = tpu.dynamic_rotate %5 by %c1_i32_15 dim 1 : vector<16x256xf32>, i32 -> vector<16x256xf32>
    %cst_16 = arith.constant 0.000000e+00 : f32
    %30 = vector.broadcast %cst_16 : f32 to vector<16x256xf32>
    %31 = arith.select %28, %29, %30 : vector<16x256xi1>, vector<16x256xf32>
    %c127_i32 = arith.constant 127 : i32
    %32 = vector.broadcast %c127_i32 : i32 to vector<16x256xi32>
    %33 = arith.cmpi slt, %22, %32 : vector<16x256xi32>
    %c255_i32 = arith.constant 255 : i32
    %34 = tpu.dynamic_rotate %5 by %c255_i32 dim 1 : vector<16x256xf32>, i32 -> vector<16x256xf32>
    %cst_17 = arith.constant 0.000000e+00 : f32
    %35 = vector.broadcast %cst_17 : f32 to vector<16x256xf32>
    %36 = arith.select %33, %34, %35 : vector<16x256xi1>, vector<16x256xf32>
    %37 = tpu.concatenate %31, %5, %36 in 0 : vector<16x256xf32>, vector<16x256xf32>, vector<16x256xf32> -> vector<48x256xf32>
    %cst_18 = arith.constant dense<0.000000e+00> : vector<32x256xf32>
    %38 = tpu.matmul %23, %37, %cst_18 {dimension_numbers = #tpu.dot_dimension_numbers<[1], [0], [0], [1], [0, 0, 1, 1], [], []>} : vector<32x48xf32>, vector<48x256xf32>, vector<32x256xf32> -> vector<32x256xf32>
    %39 = vector.broadcast %24 : vector<32x1xf32> to vector<32x256xf32>
    %40 = arith.addf %38, %39 : vector<32x256xf32>
    %41 = vector.extract_strided_slice %40 {offsets = [0, 0], sizes = [16, 256], strides = [1, 1]} : vector<32x256xf32> to vector<16x256xf32>
    %42 = math.tanh %41 : vector<16x256xf32>
    %43 = vector.extract_strided_slice %40 {offsets = [16, 0], sizes = [16, 256], strides = [1, 1]} : vector<32x256xf32> to vector<16x256xf32>
    %44 = arith.negf %43 : vector<16x256xf32>
    %45 = math.exp %44 : vector<16x256xf32>
    %cst_19 = arith.constant 1.000000e+00 : f32
    %46 = vector.broadcast %cst_19 : f32 to vector<16x256xf32>
    %47 = arith.addf %46, %45 : vector<16x256xf32>
    %48 = arith.divf %46, %47 : vector<16x256xf32>
    %49 = arith.mulf %42, %48 : vector<16x256xf32>
    %cst_20 = arith.constant dense<0.000000e+00> : vector<16x256xf32>
    %50 = tpu.matmul %25, %49, %cst_20 {dimension_numbers = #tpu.dot_dimension_numbers<[1], [0], [0], [1], [0, 0, 1, 1], [], []>} : vector<16x16xf32>, vector<16x256xf32>, vector<16x256xf32> -> vector<16x256xf32>
    %51 = vector.broadcast %26 : vector<16x1xf32> to vector<16x256xf32>
    %52 = arith.addf %50, %51 : vector<16x256xf32>
    %53 = arith.addf %5, %52 : vector<16x256xf32>
    %c64 = arith.constant 64 : index
    %c0_21 = arith.constant 0 : index
    %54 = vector.load %arg2[%c64, %c0_21] : memref<160x48xf32, #tpu.memory_space<vmem>>, vector<32x48xf32>
    %c64_22 = arith.constant 64 : index
    %c0_23 = arith.constant 0 : index
    %55 = vector.load %arg3[%c64_22, %c0_23] : memref<160x1xf32, #tpu.memory_space<vmem>>, vector<32x1xf32>
    %c96 = arith.constant 96 : index
    %c0_24 = arith.constant 0 : index
    %56 = vector.load %arg2[%c96, %c0_24] : memref<160x48xf32, #tpu.memory_space<vmem>>, vector<16x16xf32>
    %c96_25 = arith.constant 96 : index
    %c0_26 = arith.constant 0 : index
    %57 = vector.load %arg3[%c96_25, %c0_26] : memref<160x1xf32, #tpu.memory_space<vmem>>, vector<16x1xf32>
    %c2_i32 = arith.constant 2 : i32
    %58 = vector.broadcast %c2_i32 : i32 to vector<16x256xi32>
    %59 = arith.cmpi sge, %22, %58 : vector<16x256xi32>
    %c2_i32_27 = arith.constant 2 : i32
    %60 = tpu.dynamic_rotate %52 by %c2_i32_27 dim 1 : vector<16x256xf32>, i32 -> vector<16x256xf32>
    %cst_28 = arith.constant 0.000000e+00 : f32
    %61 = vector.broadcast %cst_28 : f32 to vector<16x256xf32>
    %62 = arith.select %59, %60, %61 : vector<16x256xi1>, vector<16x256xf32>
    %c126_i32 = arith.constant 126 : i32
    %63 = vector.broadcast %c126_i32 : i32 to vector<16x256xi32>
    %64 = arith.cmpi slt, %22, %63 : vector<16x256xi32>
    %c254_i32 = arith.constant 254 : i32
    %65 = tpu.dynamic_rotate %52 by %c254_i32 dim 1 : vector<16x256xf32>, i32 -> vector<16x256xf32>
    %cst_29 = arith.constant 0.000000e+00 : f32
    %66 = vector.broadcast %cst_29 : f32 to vector<16x256xf32>
    %67 = arith.select %64, %65, %66 : vector<16x256xi1>, vector<16x256xf32>
    %68 = tpu.concatenate %62, %52, %67 in 0 : vector<16x256xf32>, vector<16x256xf32>, vector<16x256xf32> -> vector<48x256xf32>
    %cst_30 = arith.constant dense<0.000000e+00> : vector<32x256xf32>
    %69 = tpu.matmul %54, %68, %cst_30 {dimension_numbers = #tpu.dot_dimension_numbers<[1], [0], [0], [1], [0, 0, 1, 1], [], []>} : vector<32x48xf32>, vector<48x256xf32>, vector<32x256xf32> -> vector<32x256xf32>
    %70 = vector.broadcast %55 : vector<32x1xf32> to vector<32x256xf32>
    %71 = arith.addf %69, %70 : vector<32x256xf32>
    %72 = vector.extract_strided_slice %71 {offsets = [0, 0], sizes = [16, 256], strides = [1, 1]} : vector<32x256xf32> to vector<16x256xf32>
    %73 = math.tanh %72 : vector<16x256xf32>
    %74 = vector.extract_strided_slice %71 {offsets = [16, 0], sizes = [16, 256], strides = [1, 1]} : vector<32x256xf32> to vector<16x256xf32>
    %75 = arith.negf %74 : vector<16x256xf32>
    %76 = math.exp %75 : vector<16x256xf32>
    %cst_31 = arith.constant 1.000000e+00 : f32
    %77 = vector.broadcast %cst_31 : f32 to vector<16x256xf32>
    %78 = arith.addf %77, %76 : vector<16x256xf32>
    %79 = arith.divf %77, %78 : vector<16x256xf32>
    %80 = arith.mulf %73, %79 : vector<16x256xf32>
    %cst_32 = arith.constant dense<0.000000e+00> : vector<16x256xf32>
    %81 = tpu.matmul %56, %80, %cst_32 {dimension_numbers = #tpu.dot_dimension_numbers<[1], [0], [0], [1], [0, 0, 1, 1], [], []>} : vector<16x16xf32>, vector<16x256xf32>, vector<16x256xf32> -> vector<16x256xf32>
    %82 = vector.broadcast %57 : vector<16x1xf32> to vector<16x256xf32>
    %83 = arith.addf %81, %82 : vector<16x256xf32>
    %84 = arith.addf %53, %83 : vector<16x256xf32>
    %c112 = arith.constant 112 : index
    %c0_33 = arith.constant 0 : index
    %85 = vector.load %arg2[%c112, %c0_33] : memref<160x48xf32, #tpu.memory_space<vmem>>, vector<32x48xf32>
    %c112_34 = arith.constant 112 : index
    %c0_35 = arith.constant 0 : index
    %86 = vector.load %arg3[%c112_34, %c0_35] : memref<160x1xf32, #tpu.memory_space<vmem>>, vector<32x1xf32>
    %c144 = arith.constant 144 : index
    %c0_36 = arith.constant 0 : index
    %87 = vector.load %arg2[%c144, %c0_36] : memref<160x48xf32, #tpu.memory_space<vmem>>, vector<16x16xf32>
    %c144_37 = arith.constant 144 : index
    %c0_38 = arith.constant 0 : index
    %88 = vector.load %arg3[%c144_37, %c0_38] : memref<160x1xf32, #tpu.memory_space<vmem>>, vector<16x1xf32>
    %c4_i32 = arith.constant 4 : i32
    %89 = vector.broadcast %c4_i32 : i32 to vector<16x256xi32>
    %90 = arith.cmpi sge, %22, %89 : vector<16x256xi32>
    %c4_i32_39 = arith.constant 4 : i32
    %91 = tpu.dynamic_rotate %83 by %c4_i32_39 dim 1 : vector<16x256xf32>, i32 -> vector<16x256xf32>
    %cst_40 = arith.constant 0.000000e+00 : f32
    %92 = vector.broadcast %cst_40 : f32 to vector<16x256xf32>
    %93 = arith.select %90, %91, %92 : vector<16x256xi1>, vector<16x256xf32>
    %c124_i32 = arith.constant 124 : i32
    %94 = vector.broadcast %c124_i32 : i32 to vector<16x256xi32>
    %95 = arith.cmpi slt, %22, %94 : vector<16x256xi32>
    %c252_i32 = arith.constant 252 : i32
    %96 = tpu.dynamic_rotate %83 by %c252_i32 dim 1 : vector<16x256xf32>, i32 -> vector<16x256xf32>
    %cst_41 = arith.constant 0.000000e+00 : f32
    %97 = vector.broadcast %cst_41 : f32 to vector<16x256xf32>
    %98 = arith.select %95, %96, %97 : vector<16x256xi1>, vector<16x256xf32>
    %99 = tpu.concatenate %93, %83, %98 in 0 : vector<16x256xf32>, vector<16x256xf32>, vector<16x256xf32> -> vector<48x256xf32>
    %cst_42 = arith.constant dense<0.000000e+00> : vector<32x256xf32>
    %100 = tpu.matmul %85, %99, %cst_42 {dimension_numbers = #tpu.dot_dimension_numbers<[1], [0], [0], [1], [0, 0, 1, 1], [], []>} : vector<32x48xf32>, vector<48x256xf32>, vector<32x256xf32> -> vector<32x256xf32>
    %101 = vector.broadcast %86 : vector<32x1xf32> to vector<32x256xf32>
    %102 = arith.addf %100, %101 : vector<32x256xf32>
    %103 = vector.extract_strided_slice %102 {offsets = [0, 0], sizes = [16, 256], strides = [1, 1]} : vector<32x256xf32> to vector<16x256xf32>
    %104 = math.tanh %103 : vector<16x256xf32>
    %105 = vector.extract_strided_slice %102 {offsets = [16, 0], sizes = [16, 256], strides = [1, 1]} : vector<32x256xf32> to vector<16x256xf32>
    %106 = arith.negf %105 : vector<16x256xf32>
    %107 = math.exp %106 : vector<16x256xf32>
    %cst_43 = arith.constant 1.000000e+00 : f32
    %108 = vector.broadcast %cst_43 : f32 to vector<16x256xf32>
    %109 = arith.addf %108, %107 : vector<16x256xf32>
    %110 = arith.divf %108, %109 : vector<16x256xf32>
    %111 = arith.mulf %104, %110 : vector<16x256xf32>
    %cst_44 = arith.constant dense<0.000000e+00> : vector<16x256xf32>
    %112 = tpu.matmul %87, %111, %cst_44 {dimension_numbers = #tpu.dot_dimension_numbers<[1], [0], [0], [1], [0, 0, 1, 1], [], []>} : vector<16x16xf32>, vector<16x256xf32>, vector<16x256xf32> -> vector<16x256xf32>
    %113 = vector.broadcast %88 : vector<16x1xf32> to vector<16x256xf32>
    %114 = arith.addf %112, %113 : vector<16x256xf32>
    %115 = arith.addf %84, %114 : vector<16x256xf32>
    %c0_45 = arith.constant 0 : index
    %c0_46 = arith.constant 0 : index
    %116 = vector.load %arg4[%c0_45, %c0_46] : memref<16x256xf32, #tpu.memory_space<vmem>>, vector<16x256xf32>
    tpu.vector_store %arg4[%c0_45, %c0_46], %115 {strides = array<i32>} : memref<16x256xf32, #tpu.memory_space<vmem>>, vector<16x256xf32>,
    return
  }
  func.func @transform_0(%arg0: i32) -> (i32, i32) {
    %c0_i32 = arith.constant 0 : i32
    %c0_i32_0 = arith.constant 0 : i32
    return %c0_i32, %arg0 : i32, i32
  }
  func.func @transform_1(%arg0: i32) -> (i32, i32) {
    %c0_i32 = arith.constant 0 : i32
    %c0_i32_0 = arith.constant 0 : i32
    %c0_i32_1 = arith.constant 0 : i32
    return %c0_i32, %c0_i32_0 : i32, i32
  }
  func.func @transform_2(%arg0: i32) -> (i32, i32) {
    %c0_i32 = arith.constant 0 : i32
    %c0_i32_0 = arith.constant 0 : i32
    %c0_i32_1 = arith.constant 0 : i32
    return %c0_i32, %c0_i32_0 : i32, i32
  }
  func.func @transform_3(%arg0: i32) -> (i32, i32) {
    %c0_i32 = arith.constant 0 : i32
    %c0_i32_0 = arith.constant 0 : i32
    return %c0_i32, %arg0 : i32, i32
  }
}

</mosaic_0001>

<llo_original>
// kernel: tpu_custom_call.1
$region0: #{tpu_custom_call.1}
  #allocation0 [shape = 'u32[]', space=smem, size = 0x4, offset = 0x4, fixed_abs, tag = 'smem constant byte address 0x4 - core index']
  #allocation1 [shape = 'u32[144,128]{1,0:T(1,128)}', space=vmem, size = 0x12000, scoped, tag = 'internal scratch']
  %s0 = inlined_call_operand.vmem [shape: f32[4,512], index: 0, kind: input, shape index: {}]
  %s1 = inlined_call_operand.vmem [shape: f32[160,48], index: 1, kind: input, shape index: {}]
  %s2 = inlined_call_operand.vmem [shape: f32[160,1], index: 2, kind: input, shape index: {}]
  %s3 = inlined_call_operand.hbm [shape: f32[16,512], index: 3, kind: output, shape index: {}]
  %s4 = sld [smem:[#allocation0]]
  $region45: #{tpu_custom_call.1} parent=0
    _
  %s6 = ssub.s32 1, %s4
  %s7 = scalar_select 0, %s6, %s4
  $region1: #{tpu_custom_call.1} parent=0
    #allocation2 [shape = 'u8[32768]{0}', space=vmem, size = 0x8000, scoped, tag = 'output window, operand 0']
    #allocation3 [shape = 's32[2]{0}', space=sflag, size = 0x8, scoped, tag = 'scoped memory for tpu_custom_call.1']
    %8 = vsyncpa [#allocation3], 0
    %s9 = scalar_lea.sflag [#allocation3], 1
    %10 = vsyncpa %s9, 0
    loop: start=0, step=1, limit=4
    $region2: #{tpu_custom_call.1} parent=1 // loop_pre_header
      _
    $region3: #{tpu_custom_call.1} parent=1 // loop_header
      %s12 = sphi 0, %s16
      %p13 = scmp.ge.s32.totalorder %s12, 4
      %s22 = sphi 0, %s24
      %s25 = sphi 0, %s22
      %s26 = sphi 0, %s25
      %s42 = sphi 0, %s26
      %s46 = sphi 0, %s46
      %s48 = sphi 0, %s46
      %s49 = sphi 0, %s48
      %s63 = sphi 0, %s49
      %s67 = sphi 0, %s67
      %s69 = sphi 0, %s67
      %s70 = sphi 0, %s69
      %s84 = sphi 0, %s70
      %s90 = sphi 0, %s92
      %s93 = sphi 0, %s90
      %s94 = sphi 0, %s93
      %s110 = sphi 0, %s94
    $region4: #{tpu_custom_call.1} parent=1 // loop_header_branch
      %15 = sbr.rel (%p13) target = $region8
    $region5: #{tpu_custom_call.1} parent=1 // loop_body
      %s17 = ssub.s32 %s12, 1
      %s18 = ssub.s32 %s12, 2
      %s19 = sadd.s32 %s12, 1
      %s20 = ssub.s32 %s12, %s19
      %p21 = scmp.eq.s32.totalorder %s20, 0
      %s23 = sadd.s32 %s22, 1
      %s24 = scalar_select %p21, %s22, %s23
      %p27 = pneg %p21
      %p28 = scmp.eq.s32.totalorder %s12, 1
      %p29 = por %p27, %p28
      %p30 = scmp.ne.s32.totalorder %s22, %s25
      %p31 = scmp.eq.s32.totalorder %s12, 0
      %p32 = por %p30, %p31
      %p33 = scmp.ne.s32.totalorder %s22, %s25
      %p34 = scmp.eq.s32.totalorder %s17, 1
      %p35 = por %p33, %p34
      %p36 = scmp.ne.s32.totalorder %s25, %s26
      %p37 = scmp.eq.s32.totalorder %s17, 0
      %p38 = por %p36, %p37
      %p39 = scmp.ne.s32.totalorder %s25, %s26
      %p40 = scmp.eq.s32.totalorder %s18, 1
      %p41 = por %p39, %p40
      %p43 = scmp.ne.s32.totalorder %s26, %s42
      %p44 = scmp.eq.s32.totalorder %s18, 0
      %p45 = por %p43, %p44
      %s47 = sadd.s32 %s46, 1
      %p50 = scmp.eq.s32.totalorder %s12, 1
      %p51 = scmp.ne.s32.totalorder %s46, %s48
      %p52 = scmp.eq.s32.totalorder %s12, 0
      %p53 = por %p51, %p52
      %p54 = scmp.ne.s32.totalorder %s46, %s48
      %p55 = scmp.eq.s32.totalorder %s17, 1
      %p56 = por %p54, %p55
      %p57 = scmp.ne.s32.totalorder %s48, %s49
      %p58 = scmp.eq.s32.totalorder %s17, 0
      %p59 = por %p57, %p58
      %p60 = scmp.ne.s32.totalorder %s48, %s49
      %p61 = scmp.eq.s32.totalorder %s18, 1
      %p62 = por %p60, %p61
      %p64 = scmp.ne.s32.totalorder %s49, %s63
      %p65 = scmp.eq.s32.totalorder %s18, 0
      %p66 = por %p64, %p65
      %s68 = sadd.s32 %s67, 1
      %p71 = scmp.eq.s32.totalorder %s12, 1
      %p72 = scmp.ne.s32.totalorder %s67, %s69
      %p73 = scmp.eq.s32.totalorder %s12, 0
      %p74 = por %p72, %p73
      %p75 = scmp.ne.s32.totalorder %s67, %s69
      %p76 = scmp.eq.s32.totalorder %s17, 1
      %p77 = por %p75, %p76
      %p78 = scmp.ne.s32.totalorder %s69, %s70
      %p79 = scmp.eq.s32.totalorder %s17, 0
      %p80 = por %p78, %p79
      %p81 = scmp.ne.s32.totalorder %s69, %s70
      %p82 = scmp.eq.s32.totalorder %s18, 1
      %p83 = por %p81, %p82
      %p85 = scmp.ne.s32.totalorder %s70, %s84
      %p86 = scmp.eq.s32.totalorder %s18, 0
      %p87 = por %p85, %p86
      %s88 = ssub.s32 %s12, %s19
      %p89 = scmp.eq.s32.totalorder %s88, 0
      %s91 = sadd.s32 %s90, 1
      %s92 = scalar_select %p89, %s90, %s91
      %p95 = pneg %p89
      %p96 = scmp.eq.s32.totalorder %s12, 1
      %p97 = por %p95, %p96
      %p98 = scmp.ne.s32.totalorder %s90, %s93
      %p99 = scmp.eq.s32.totalorder %s12, 0
      %p100 = por %p98, %p99
      %p101 = scmp.ne.s32.totalorder %s90, %s93
      %p102 = scmp.eq.s32.totalorder %s17, 1
      %p103 = por %p101, %p102
      %p104 = scmp.ne.s32.totalorder %s93, %s94
      %p105 = scmp.eq.s32.totalorder %s17, 0
      %p106 = por %p104, %p105
      %p107 = scmp.ne.s32.totalorder %s93, %s94
      %p108 = scmp.eq.s32.totalorder %s18, 1
      %p109 = por %p107, %p108
      %p111 = scmp.ne.s32.totalorder %s94, %s110
      %p112 = scmp.eq.s32.totalorder %s18, 0
      %p113 = por %p111, %p112
      %p114 = scmp.le.s32.totalorder 1, %s12
      %p115 = scmp.lt.s32.totalorder %s12, 3
      %p116 = pnand %p114, %p115
      %p117 = pneg %p116
      // Predicated region
      $region9: #{tpu_custom_call.1} parent=5 // pred_check
        _
      $region10: #{tpu_custom_call.1} parent=5 // pred_check_branch
        %119 = sbr.rel (%p116) target = $region12
      $region11: #{tpu_custom_call.1} parent=5 // pred_region
        %s120 = ssub.s32 %s12, 1
        // Predicated region
        $region13: #{tpu_custom_call.1} parent=11 // pred_check
          %p121 = pneg %p59
        $region14: #{tpu_custom_call.1} parent=11 // pred_check_branch
          %123 = sbr.rel (%p121) target = $region16
        $region15: #{tpu_custom_call.1} parent=11 // pred_region
          _
        $region16: #{tpu_custom_call.1} parent=11 // pred_fallthru
          _
        // Predicated region
        $region17: #{tpu_custom_call.1} parent=11 // pred_check
          %p124 = pneg %p80
        $region18: #{tpu_custom_call.1} parent=11 // pred_check_branch
          %126 = sbr.rel (%p124) target = $region20
        $region19: #{tpu_custom_call.1} parent=11 // pred_region
          _
        $region20: #{tpu_custom_call.1} parent=11 // pred_fallthru
          _
      $region12: #{tpu_custom_call.1} parent=5 // pred_fallthru
        _
      %p127 = scmp.lt.s32.totalorder %s12, 2
      // Predicated region
      $region21: #{tpu_custom_call.1} parent=5 // pred_check
        %p128 = pneg %p127
      $region22: #{tpu_custom_call.1} parent=5 // pred_check_branch
        %130 = sbr.rel (%p128) target = $region24
      $region23: #{tpu_custom_call.1} parent=5 // pred_region
        // Predicated region
        $region25: #{tpu_custom_call.1} parent=23 // pred_check
          %p131 = pneg %p32
        $region26: #{tpu_custom_call.1} parent=23 // pred_check_branch
          %133 = sbr.rel (%p131) target = $region28
        $region27: #{tpu_custom_call.1} parent=23 // pred_region
          %s134 = smul.u32 2, %s12
          %p135 = scmp.lt.s32.totalorder %s134, 3
          %s136 = scalar_select %p135, %s134, 3
          %s137 = smul.addr %s136, 4
          %s138 = scalar_lea.vmem %s0, %s137
          %s139 = smul.u32 2, %s12
        $region28: #{tpu_custom_call.1} parent=23 // pred_fallthru
          _
      $region24: #{tpu_custom_call.1} parent=5 // pred_fallthru
        _
      %p140 = scmp.le.s32.totalorder 1, %s12
      %p141 = scmp.lt.s32.totalorder %s12, 3
      %p142 = pnand %p140, %p141
      %p143 = pneg %p142
      // Predicated region
      $region29: #{tpu_custom_call.1} parent=5 // pred_check
        _
      $region30: #{tpu_custom_call.1} parent=5 // pred_check_branch
        %145 = sbr.rel (%p142) target = $region32
      $region31: #{tpu_custom_call.1} parent=5 // pred_region
        %s146 = ssub.s32 %s12, 1
        %s147 = smul.u32 2, %s17
        %p148 = scmp.lt.s32.totalorder %s147, 3
        %s149 = scalar_select %p148, %s147, 3
        %s150 = smul.addr %s149, 4
        %s151 = scalar_lea.vmem %s0, %s150
        %p152 = pneg %p38
        %p153 = pneg %p35
        %p154 = pneg %p59
        %p155 = pneg %p56
        %p156 = pneg %p80
        %p157 = pneg %p77
        %p158 = pneg %p106
        %p159 = pneg %p103
        %s160 = sand.u32 %s93, 1
        %s161 = scalar_lea.sflag [#allocation3], %s160
        %s162 = sand.u32 %s93, 1
        %s163 = smul.addr %s162, 32
        %s164 = scalar_lea.vmem [#allocation2], %s163
        %s165 = smul.u32 2, %s17
        %p166 = scmp.lt.s32.totalorder %s165, 3
        %s167 = scalar_select %p166, %s165, 3
        %s168 = smul.addr %s167, 4
        %s169 = scalar_lea.vmem %s0, %s168
        %s170 = smul.u32 2, %s17
        %s171 = smul.u32 2, %s17
        %v172 = vld [vmem:[%s169] sm:$0xff]
        %v173 = vld [vmem:[%s1] sm:$0xff]
        %v174 = vld [vmem:[%s1 + $0x8] sm:$0xff]
        %v175 = vld [vmem:[%s2] sm:$0xff]
        %v176 = vld [vmem:[%s2 + $0x8] sm:$0xff]
        %178 = vset.pattern.permute.xlu0 0
        %179 = vperm.xlu0 %178, %v175
        %v180 = vpop.permute.xlu0 %179
        %183 = vset.pattern.permute.xlu0 0
        %184 = vperm.xlu0 %183, %v176
        %v185 = vpop.permute.xlu0 %184
        %v188 = vcombine.high %v172, %v172
        %vm189 = vcmask 31744
        %v191 = vsel %vm189, %v173, 0
        %v194 = vsel %vm189, %v174, 0
        %vm196 = vcmask 1043456
        %v197 = vsel %vm196, %v172, 0
        %v199 = vsel %vm196, %v188, 0
        %201 = vmatprep.subr.mxu0 0.0
        %202 = vmatpush1.msra.mxu0 0.0
        %203 = vmatprep.subr.mxu0 0.0
        %204 = vmatpush1.msra.mxu0 0.0
        %205 = vmatprep.subr.mxu0 0.0
        %206 = vmatpush1.msra.mxu0 0.0
        %207 = vmatprep.subr.mxu0 0.0
        %208 = vmatpush1.msra.mxu0 0.0
        %209 = vmatprep.subr.mxu0 0.0
        %210 = vmatpush1.msra.mxu0 0.0
        %211 = vmatprep.subr.mxu0 0.0
        %212 = vmatpush1.msra.mxu0 0.0
        %213 = vmatprep.subr.mxu0 0.0
        %214 = vmatpush1.msra.mxu0 0.0
        %215 = vmatprep.subr.mxu0 0.0
        %216 = vmatpush1.msra.mxu0 0.0
        %217 = vmatprep.subr.mxu0 0.0
        %218 = vmatpush1.msra.mxu0 0.0
        %219 = vmatprep.subr.mxu0 0.0
        %220 = vmatpush1.msra.mxu0 0.0
        %221 = vmatprep.subr.mxu0 0.0
        %222 = vmatpush1.msra.mxu0 0.0
        %223 = vmatprep.subr.mxu0 0.0
        %224 = vmatpush1.msra.mxu0 0.0
        %225 = vmatprep.subr.mxu0 0.0
        %226 = vmatpush1.msra.mxu0 0.0
        %227 = vmatprep.subr.mxu0 0.0
        %228 = vmatpush1.msra.mxu0 0.0
        %229 = vmatprep.subr.mxu0 0.0
        %230 = vmatpush1.msra.mxu0 0.0
        %231 = vmatprep.subr.mxu0 %v199
        %232 = vmatpush1.msra.mxu0 %v197
        %233 = vmatprep.subr.mxu0 0.0
        %234 = vmatpush2.msra.mxu0 0.0
        %235 = vmatprep.subr.mxu0 0.0
        %236 = vmatpush2.msra.mxu0 0.0
        %237 = vmatprep.subr.mxu0 0.0
        %238 = vmatpush2.msra.mxu0 0.0
        %239 = vmatprep.subr.mxu0 0.0
        %240 = vmatpush2.msra.mxu0 0.0
        %241 = vmatprep.subr.mxu0 0.0
        %242 = vmatpush2.msra.mxu0 0.0
        %243 = vmatprep.subr.mxu0 0.0
        %244 = vmatpush2.msra.mxu0 0.0
        %245 = vmatprep.subr.mxu0 0.0
        %246 = vmatpush2.msra.mxu0 0.0
        %247 = vmatprep.subr.mxu0 0.0
        %248 = vmatpush2.msra.mxu0 0.0
        %249 = vmatprep.subr.mxu0 0.0
        %250 = vmatpush2.msra.mxu0 0.0
        %251 = vmatprep.subr.mxu0 0.0
        %252 = vmatpush2.msra.mxu0 0.0
        %253 = vmatprep.subr.mxu0 0.0
        %254 = vmatpush2.msra.mxu0 0.0
        %255 = vmatprep.subr.mxu0 0.0
        %256 = vmatpush2.msra.mxu0 0.0
        %257 = vmatprep.subr.mxu0 0.0
        %258 = vmatpush2.msra.mxu0 0.0
        %259 = vmatprep.subr.mxu0 0.0
        %260 = vmatpush2.msra.mxu0 0.0
        %261 = vmatprep.subr.mxu0 0.0
        %262 = vmatpush2.msra.mxu0 0.0
        %263 = vmatprep.subr.mxu0 0.0
        %264 = vmatpush2.msra.mxu0 0.0
        %265 = vmatprep.mubr.f32.mxu0 0.0
        %266 = vmatmul.mubr.f32.gmra.mxu0 %v191
        %v267 = vpop.f32.mrf.mxu0
        %v268 = vadd.f32 %v180, %v267
        %v269 = vpop.f32.mrf.mxu0
        %v270 = vadd.f32 %v180, %v269
        %271 = vmatprep.mubr.f32.mxu0 0.0
        %272 = vmatmul.mubr.f32.gmra.mxu0 %v194
        %v273 = vpop.f32.mrf.mxu0
        %v274 = vadd.f32 %v185, %v273
        %v275 = vpop.f32.mrf.mxu0
        %v276 = vadd.f32 %v185, %v275
        %277 = vdwg.mxu0
        %v278 = vlaneseq
        %v279 = vand.u32 %v278, 127
        %v280 = vadd.s32 %v279, 128
        %vm281 = vcmp.lt.s32.totalorder %v279, 0
        %v282 = vsub.s32 0, %v279
        %v283 = vsel %vm281, %v282, %v279
        %v284 = vshrl.u32 %v283, 7
        %v285 = vand.u32 %v283, 127
        %v286 = vsub.s32 0, %v285
        %v287 = vsel %vm281, %v286, %v285
        %vm288 = vcmp.lt.s32.totalorder %v280, 0
        %v289 = vsub.s32 0, %v280
        %v290 = vsel %vm288, %v289, %v280
        %v291 = vshrl.u32 %v290, 7
        %v292 = vand.u32 %v290, 127
        %v293 = vsub.s32 0, %v292
        %v294 = vsel %vm288, %v293, %v292
        %vm295 = vcmp.ne.s32.totalorder %v287, 0
        %vm296 = vcmp.ne.s32.totalorder %v294, 0
        %vm297 = vcmp.lt.s32.totalorder %v287, 0
        %vm298 = vcmp.lt.s32.totalorder %v294, 0
        %vm299 = vmand %vm297, %vm295
        %vm300 = vmand %vm298, %vm296
        %v301 = vadd.s32 %v287, 128
        %v302 = vadd.s32 %v294, 128
        %v303 = vsel %vm299, %v301, %v287
        %v304 = vsel %vm300, %v302, %v294
        %v305 = vld [vmem:[%s1 + $0x10] sm:$0xff]
        %v306 = vld [vmem:[%s1 + $0x18] sm:$0xff]
        %v307 = vld [vmem:[%s1 + $0x20] sm:$0xff]
        %v308 = vld [vmem:[%s1 + $0x28] sm:$0xff]
        %v309 = vld [vmem:[%s2 + $0x10] sm:$0xff]
        %v310 = vld [vmem:[%s2 + $0x18] sm:$0xff]
        %v311 = vld [vmem:[%s2 + $0x20] sm:$0xff]
        %v312 = vld [vmem:[%s2 + $0x28] sm:$0xff]
        %v313 = vld [vmem:[%s1 + $0x30] sm:$0xff]
        %v314 = vld [vmem:[%s1 + $0x38] sm:$0xff]
        %v315 = vld [vmem:[%s2 + $0x30] sm:$0xff]
        %v316 = vld [vmem:[%s2 + $0x38] sm:$0xff]
        %vm317 = vcmp.ge.s32.totalorder %v303, 1
        %vm318 = vcmp.ge.s32.totalorder %v304, 1
        %319 = vrot.lane.b32.xlu0 %v268, 1
        %v320 = vpop.permute.xlu0 %319
        %321 = vrot.lane.b32.xlu0 %v274, 1
        %v322 = vpop.permute.xlu0 %321
        %323 = vrot.lane.b32.xlu0 %v270, 1
        %v324 = vpop.permute.xlu0 %323
        %325 = vrot.lane.b32.xlu0 %v276, 1
        %v326 = vpop.permute.xlu0 %325
        %vm327 = vcmp.lt.s32.totalorder %v279, 1
        %v328 = vsel %vm327, %v320, %v324
        %v329 = vsel %vm327, %v322, %v326
        %v330 = vsel %vm327, %v324, %v320
        %v331 = vsel %vm327, %v326, %v322
        %v332 = vsel %vm317, %v330, 0.0
        %v333 = vsel %vm318, %v328, 0.0
        %v334 = vsel %vm317, %v331, 0.0
        %v335 = vsel %vm318, %v329, 0.0
        %vm336 = vcmp.lt.s32.totalorder %v303, 127
        %vm337 = vcmp.lt.s32.totalorder %v304, 127
        %338 = vrot.lane.b32.xlu0 %v268, 127
        %v339 = vpop.permute.xlu0 %338
        %340 = vrot.lane.b32.xlu0 %v274, 127
        %v341 = vpop.permute.xlu0 %340
        %342 = vrot.lane.b32.xlu0 %v270, 127
        %v343 = vpop.permute.xlu0 %342
        %344 = vrot.lane.b32.xlu0 %v276, 127
        %v345 = vpop.permute.xlu0 %344
        %vm346 = vcmp.lt.s32.totalorder %v279, 127
        %v347 = vsel %vm346, %v339, %v343
        %v348 = vsel %vm346, %v341, %v345
        %v349 = vsel %vm346, %v343, %v339
        %v350 = vsel %vm346, %v345, %v341
        %v351 = vsel %vm336, %v347, 0.0
        %v352 = vsel %vm337, %v349, 0.0
        %v353 = vsel %vm336, %v348, 0.0
        %v354 = vsel %vm337, %v350, 0.0
        %356 = vset.pattern.permute.xlu0 0
        %357 = vperm.xlu0 %356, %v309
        %v358 = vpop.permute.xlu0 %357
        %361 = vset.pattern.permute.xlu0 0
        %362 = vperm.xlu0 %361, %v310
        %v363 = vpop.permute.xlu0 %362
        %366 = vset.pattern.permute.xlu0 0
        %367 = vperm.xlu0 %366, %v311
        %v368 = vpop.permute.xlu0 %367
        %371 = vset.pattern.permute.xlu0 0
        %372 = vperm.xlu0 %371, %v312
        %v373 = vpop.permute.xlu0 %372
        %vm375 = vcmask 392192
        %v377 = vsel %vm375, %v305, 0
        %v380 = vsel %vm375, %v306, 0
        %v383 = vsel %vm375, %v307, 0
        %v386 = vsel %vm375, %v308, 0
        %388 = vmatprep.subr.mxu0 0.0
        %389 = vmatpush1.msra.mxu0 0.0
        %390 = vmatprep.subr.mxu0 0.0
        %391 = vmatpush1.msra.mxu0 0.0
        %392 = vmatprep.subr.mxu0 0.0
        %393 = vmatpush1.msra.mxu0 0.0
        %394 = vmatprep.subr.mxu0 0.0
        %395 = vmatpush1.msra.mxu0 0.0
        %396 = vmatprep.subr.mxu0 0.0
        %397 = vmatpush1.msra.mxu0 0.0
        %398 = vmatprep.subr.mxu0 0.0
        %399 = vmatpush1.msra.mxu0 0.0
        %400 = vmatprep.subr.mxu0 0.0
        %401 = vmatpush1.msra.mxu0 0.0
        %402 = vmatprep.subr.mxu0 0.0
        %403 = vmatpush1.msra.mxu0 0.0
        %404 = vmatprep.subr.mxu0 0.0
        %405 = vmatpush1.msra.mxu0 0.0
        %406 = vmatprep.subr.mxu0 0.0
        %407 = vmatpush1.msra.mxu0 0.0
        %408 = vmatprep.subr.mxu0 %v354
        %409 = vmatpush1.msra.mxu0 %v353
        %410 = vmatprep.subr.mxu0 %v352
        %411 = vmatpush1.msra.mxu0 %v351
        %412 = vmatprep.subr.mxu0 %v276
        %413 = vmatpush1.msra.mxu0 %v274
        %414 = vmatprep.subr.mxu0 %v270
        %415 = vmatpush1.msra.mxu0 %v268
        %416 = vmatprep.subr.mxu0 %v335
        %417 = vmatpush1.msra.mxu0 %v334
        %418 = vmatprep.subr.mxu0 %v333
        %419 = vmatpush1.msra.mxu0 %v332
        %420 = vmatprep.subr.mxu0 0.0
        %421 = vmatpush2.msra.mxu0 0.0
        %422 = vmatprep.subr.mxu0 0.0
        %423 = vmatpush2.msra.mxu0 0.0
        %424 = vmatprep.subr.mxu0 0.0
        %425 = vmatpush2.msra.mxu0 0.0
        %426 = vmatprep.subr.mxu0 0.0
        %427 = vmatpush2.msra.mxu0 0.0
        %428 = vmatprep.subr.mxu0 0.0
        %429 = vmatpush2.msra.mxu0 0.0
        %430 = vmatprep.subr.mxu0 0.0
        %431 = vmatpush2.msra.mxu0 0.0
        %432 = vmatprep.subr.mxu0 0.0
        %433 = vmatpush2.msra.mxu0 0.0
        %434 = vmatprep.subr.mxu0 0.0
        %435 = vmatpush2.msra.mxu0 0.0
        %436 = vmatprep.subr.mxu0 0.0
        %437 = vmatpush2.msra.mxu0 0.0
        %438 = vmatprep.subr.mxu0 0.0
        %439 = vmatpush2.msra.mxu0 0.0
        %440 = vmatprep.subr.mxu0 0.0
        %441 = vmatpush2.msra.mxu0 0.0
        %442 = vmatprep.subr.mxu0 0.0
        %443 = vmatpush2.msra.mxu0 0.0
        %444 = vmatprep.subr.mxu0 0.0
        %445 = vmatpush2.msra.mxu0 0.0
        %446 = vmatprep.subr.mxu0 0.0
        %447 = vmatpush2.msra.mxu0 0.0
        %448 = vmatprep.subr.mxu0 0.0
        %449 = vmatpush2.msra.mxu0 0.0
        %450 = vmatprep.subr.mxu0 0.0
        %451 = vmatpush2.msra.mxu0 0.0
        %452 = vmatprep.mubr.f32.mxu0 0.0
        %453 = vmatmul.mubr.f32.gmra.mxu0 %v377
        %v454 = vpop.f32.mrf.mxu0
        %v455 = vadd.f32 %v358, %v454
        %v456 = vpop.f32.mrf.mxu0
        %v457 = vadd.f32 %v358, %v456
        %458 = vmatprep.mubr.f32.mxu0 0.0
        %459 = vmatmul.mubr.f32.gmra.mxu0 %v380
        %v460 = vpop.f32.mrf.mxu0
        %v461 = vadd.f32 %v363, %v460
        %v462 = vpop.f32.mrf.mxu0
        %v463 = vadd.f32 %v363, %v462
        %464 = vmatprep.mubr.f32.mxu0 0.0
        %465 = vmatmul.mubr.f32.gmra.mxu0 %v383
        %v466 = vpop.f32.mrf.mxu0
        %v467 = vadd.f32 %v368, %v466
        %v468 = vpop.f32.mrf.mxu0
        %v469 = vadd.f32 %v368, %v468
        %470 = vmatprep.mubr.f32.mxu0 0.0
        %471 = vmatmul.mubr.f32.gmra.mxu0 %v386
        %v472 = vpop.f32.mrf.mxu0
        %v473 = vadd.f32 %v373, %v472
        %v474 = vpop.f32.mrf.mxu0
        %v475 = vadd.f32 %v373, %v474
        %476 = vdwg.mxu0
        %v477 = vtanh.pop %v455
        %v478 = vtanh.pop %v457
        %v479 = vtanh.pop %v461
        %v480 = vtanh.pop %v463
        %v481 = vxor.u32 %v467, 2147483648
        %v482 = vxor.u32 %v469, 2147483648
        %v483 = vxor.u32 %v473, 2147483648
        %v484 = vxor.u32 %v475, 2147483648
        %v485 = vmul.f32 %v481, 1.442695
        %v486 = vpow.pop %v485
        %v487 = vmul.f32 %v482, 1.442695
        %v488 = vpow.pop %v487
        %v489 = vmul.f32 %v483, 1.442695
        %v490 = vpow.pop %v489
        %v491 = vmul.f32 %v484, 1.442695
        %v492 = vpow.pop %v491
        %v493 = vadd.f32 %v486, 1.0
        %v494 = vadd.f32 %v488, 1.0
        %v495 = vadd.f32 %v490, 1.0
        %v496 = vadd.f32 %v492, 1.0
        %v497 = vrcp.pop %v493
        %v498 = vmul.f32 1.0, %v497
        %v499 = vrcp.pop %v494
        %v500 = vmul.f32 1.0, %v499
        %v501 = vrcp.pop %v495
        %v502 = vmul.f32 1.0, %v501
        %v503 = vrcp.pop %v496
        %v504 = vmul.f32 1.0, %v503
        %v505 = vmul.f32 %v477, %v498
        %v506 = vmul.f32 %v478, %v500
        %v507 = vmul.f32 %v479, %v502
        %v508 = vmul.f32 %v480, %v504
        %510 = vset.pattern.permute.xlu0 0
        %511 = vperm.xlu0 %510, %v315
        %v512 = vpop.permute.xlu0 %511
        %515 = vset.pattern.permute.xlu0 0
        %516 = vperm.xlu0 %515, %v316
        %v517 = vpop.permute.xlu0 %516
        %vm519 = vcmask 130048
        %v521 = vsel %vm519, %v313, 0
        %v524 = vsel %vm519, %v314, 0
        %526 = vmatprep.subr.mxu0 0.0
        %527 = vmatpush1.msra.mxu0 0.0
        %528 = vmatprep.subr.mxu0 0.0
        %529 = vmatpush1.msra.mxu0 0.0
        %530 = vmatprep.subr.mxu0 0.0
        %531 = vmatpush1.msra.mxu0 0.0
        %532 = vmatprep.subr.mxu0 0.0
        %533 = vmatpush1.msra.mxu0 0.0
        %534 = vmatprep.subr.mxu0 0.0
        %535 = vmatpush1.msra.mxu0 0.0
        %536 = vmatprep.subr.mxu0 0.0
        %537 = vmatpush1.msra.mxu0 0.0
        %538 = vmatprep.subr.mxu0 0.0
        %539 = vmatpush1.msra.mxu0 0.0
        %540 = vmatprep.subr.mxu0 0.0
        %541 = vmatpush1.msra.mxu0 0.0
        %542 = vmatprep.subr.mxu0 0.0
        %543 = vmatpush1.msra.mxu0 0.0
        %544 = vmatprep.subr.mxu0 0.0
        %545 = vmatpush1.msra.mxu0 0.0
        %546 = vmatprep.subr.mxu0 0.0
        %547 = vmatpush1.msra.mxu0 0.0
        %548 = vmatprep.subr.mxu0 0.0
        %549 = vmatpush1.msra.mxu0 0.0
        %550 = vmatprep.subr.mxu0 0.0
        %551 = vmatpush1.msra.mxu0 0.0
        %552 = vmatprep.subr.mxu0 0.0
        %553 = vmatpush1.msra.mxu0 0.0
        %554 = vmatprep.subr.mxu0 %v508
        %555 = vmatpush1.msra.mxu0 %v507
        %556 = vmatprep.subr.mxu0 %v506
        %557 = vmatpush1.msra.mxu0 %v505
        %558 = vmatprep.subr.mxu0 0.0
        %559 = vmatpush2.msra.mxu0 0.0
        %560 = vmatprep.subr.mxu0 0.0
        %561 = vmatpush2.msra.mxu0 0.0
        %562 = vmatprep.subr.mxu0 0.0
        %563 = vmatpush2.msra.mxu0 0.0
        %564 = vmatprep.subr.mxu0 0.0
        %565 = vmatpush2.msra.mxu0 0.0
        %566 = vmatprep.subr.mxu0 0.0
        %567 = vmatpush2.msra.mxu0 0.0
        %568 = vmatprep.subr.mxu0 0.0
        %569 = vmatpush2.msra.mxu0 0.0
        %570 = vmatprep.subr.mxu0 0.0
        %571 = vmatpush2.msra.mxu0 0.0
        %572 = vmatprep.subr.mxu0 0.0
        %573 = vmatpush2.msra.mxu0 0.0
        %574 = vmatprep.subr.mxu0 0.0
        %575 = vmatpush2.msra.mxu0 0.0
        %576 = vmatprep.subr.mxu0 0.0
        %577 = vmatpush2.msra.mxu0 0.0
        %578 = vmatprep.subr.mxu0 0.0
        %579 = vmatpush2.msra.mxu0 0.0
        %580 = vmatprep.subr.mxu0 0.0
        %581 = vmatpush2.msra.mxu0 0.0
        %582 = vmatprep.subr.mxu0 0.0
        %583 = vmatpush2.msra.mxu0 0.0
        %584 = vmatprep.subr.mxu0 0.0
        %585 = vmatpush2.msra.mxu0 0.0
        %586 = vmatprep.subr.mxu0 0.0
        %587 = vmatpush2.msra.mxu0 0.0
        %588 = vmatprep.subr.mxu0 0.0
        %589 = vmatpush2.msra.mxu0 0.0
        %590 = vmatprep.mubr.f32.mxu0 0.0
        %591 = vmatmul.mubr.f32.gmra.mxu0 %v521
        %v592 = vpop.f32.mrf.mxu0
        %v593 = vadd.f32 %v512, %v592
        %v594 = vpop.f32.mrf.mxu0
        %v595 = vadd.f32 %v512, %v594
        %596 = vmatprep.mubr.f32.mxu0 0.0
        %597 = vmatmul.mubr.f32.gmra.mxu0 %v524
        %v598 = vpop.f32.mrf.mxu0
        %v599 = vadd.f32 %v517, %v598
        %v600 = vpop.f32.mrf.mxu0
        %v601 = vadd.f32 %v517, %v600
        %602 = vdwg.mxu0
        %v603 = vadd.f32 %v268, %v593
        %v604 = vadd.f32 %v270, %v595
        %v605 = vadd.f32 %v274, %v599
        %v606 = vadd.f32 %v276, %v601
        %v607 = vld [vmem:[%s1 + $0x40] sm:$0xff]
        %v608 = vld [vmem:[%s1 + $0x48] sm:$0xff]
        %v609 = vld [vmem:[%s1 + $0x50] sm:$0xff]
        %v610 = vld [vmem:[%s1 + $0x58] sm:$0xff]
        %v611 = vld [vmem:[%s2 + $0x40] sm:$0xff]
        %v612 = vld [vmem:[%s2 + $0x48] sm:$0xff]
        %v613 = vld [vmem:[%s2 + $0x50] sm:$0xff]
        %v614 = vld [vmem:[%s2 + $0x58] sm:$0xff]
        %v615 = vld [vmem:[%s1 + $0x60] sm:$0xff]
        %v616 = vld [vmem:[%s1 + $0x68] sm:$0xff]
        %v617 = vld [vmem:[%s2 + $0x60] sm:$0xff]
        %v618 = vld [vmem:[%s2 + $0x68] sm:$0xff]
        %vm619 = vcmp.ge.s32.totalorder %v303, 2
        %vm620 = vcmp.ge.s32.totalorder %v304, 2
        %621 = vrot.lane.b32.xlu0 %v593, 2
        %v622 = vpop.permute.xlu0 %621
        %623 = vrot.lane.b32.xlu0 %v599, 2
        %v624 = vpop.permute.xlu0 %623
        %625 = vrot.lane.b32.xlu0 %v595, 2
        %v626 = vpop.permute.xlu0 %625
        %627 = vrot.lane.b32.xlu0 %v601, 2
        %v628 = vpop.permute.xlu0 %627
        %vm629 = vcmp.lt.s32.totalorder %v279, 2
        %v630 = vsel %vm629, %v622, %v626
        %v631 = vsel %vm629, %v624, %v628
        %v632 = vsel %vm629, %v626, %v622
        %v633 = vsel %vm629, %v628, %v624
        %v634 = vsel %vm619, %v632, 0.0
        %v635 = vsel %vm620, %v630, 0.0
        %v636 = vsel %vm619, %v633, 0.0
        %v637 = vsel %vm620, %v631, 0.0
        %vm638 = vcmp.lt.s32.totalorder %v303, 126
        %vm639 = vcmp.lt.s32.totalorder %v304, 126
        %640 = vrot.lane.b32.xlu0 %v593, 126
        %v641 = vpop.permute.xlu0 %640
        %642 = vrot.lane.b32.xlu0 %v599, 126
        %v643 = vpop.permute.xlu0 %642
        %644 = vrot.lane.b32.xlu0 %v595, 126
        %v645 = vpop.permute.xlu0 %644
        %646 = vrot.lane.b32.xlu0 %v601, 126
        %v647 = vpop.permute.xlu0 %646
        %vm648 = vcmp.lt.s32.totalorder %v279, 126
        %v649 = vsel %vm648, %v641, %v645
        %v650 = vsel %vm648, %v643, %v647
        %v651 = vsel %vm648, %v645, %v641
        %v652 = vsel %vm648, %v647, %v643
        %v653 = vsel %vm638, %v649, 0.0
        %v654 = vsel %vm639, %v651, 0.0
        %v655 = vsel %vm638, %v650, 0.0
        %v656 = vsel %vm639, %v652, 0.0
        %658 = vset.pattern.permute.xlu0 0
        %659 = vperm.xlu0 %658, %v611
        %v660 = vpop.permute.xlu0 %659
        %663 = vset.pattern.permute.xlu0 0
        %664 = vperm.xlu0 %663, %v612
        %v665 = vpop.permute.xlu0 %664
        %668 = vset.pattern.permute.xlu0 0
        %669 = vperm.xlu0 %668, %v613
        %v670 = vpop.permute.xlu0 %669
        %673 = vset.pattern.permute.xlu0 0
        %674 = vperm.xlu0 %673, %v614
        %v675 = vpop.permute.xlu0 %674
        %v678 = vsel %vm375, %v607, 0
        %v681 = vsel %vm375, %v608, 0
        %v684 = vsel %vm375, %v609, 0
        %v687 = vsel %vm375, %v610, 0
        %689 = vmatprep.subr.mxu0 0.0
        %690 = vmatpush1.msra.mxu0 0.0
        %691 = vmatprep.subr.mxu0 0.0
        %692 = vmatpush1.msra.mxu0 0.0
        %693 = vmatprep.subr.mxu0 0.0
        %694 = vmatpush1.msra.mxu0 0.0
        %695 = vmatprep.subr.mxu0 0.0
        %696 = vmatpush1.msra.mxu0 0.0
        %697 = vmatprep.subr.mxu0 0.0
        %698 = vmatpush1.msra.mxu0 0.0
        %699 = vmatprep.subr.mxu0 0.0
        %700 = vmatpush1.msra.mxu0 0.0
        %701 = vmatprep.subr.mxu0 0.0
        %702 = vmatpush1.msra.mxu0 0.0
        %703 = vmatprep.subr.mxu0 0.0
        %704 = vmatpush1.msra.mxu0 0.0
        %705 = vmatprep.subr.mxu0 0.0
        %706 = vmatpush1.msra.mxu0 0.0
        %707 = vmatprep.subr.mxu0 0.0
        %708 = vmatpush1.msra.mxu0 0.0
        %709 = vmatprep.subr.mxu0 %v656
        %710 = vmatpush1.msra.mxu0 %v655
        %711 = vmatprep.subr.mxu0 %v654
        %712 = vmatpush1.msra.mxu0 %v653
        %713 = vmatprep.subr.mxu0 %v601
        %714 = vmatpush1.msra.mxu0 %v599
        %715 = vmatprep.subr.mxu0 %v595
        %716 = vmatpush1.msra.mxu0 %v593
        %717 = vmatprep.subr.mxu0 %v637
        %718 = vmatpush1.msra.mxu0 %v636
        %719 = vmatprep.subr.mxu0 %v635
        %720 = vmatpush1.msra.mxu0 %v634
        %721 = vmatprep.subr.mxu0 0.0
        %722 = vmatpush2.msra.mxu0 0.0
        %723 = vmatprep.subr.mxu0 0.0
        %724 = vmatpush2.msra.mxu0 0.0
        %725 = vmatprep.subr.mxu0 0.0
        %726 = vmatpush2.msra.mxu0 0.0
        %727 = vmatprep.subr.mxu0 0.0
        %728 = vmatpush2.msra.mxu0 0.0
        %729 = vmatprep.subr.mxu0 0.0
        %730 = vmatpush2.msra.mxu0 0.0
        %731 = vmatprep.subr.mxu0 0.0
        %732 = vmatpush2.msra.mxu0 0.0
        %733 = vmatprep.subr.mxu0 0.0
        %734 = vmatpush2.msra.mxu0 0.0
        %735 = vmatprep.subr.mxu0 0.0
        %736 = vmatpush2.msra.mxu0 0.0
        %737 = vmatprep.subr.mxu0 0.0
        %738 = vmatpush2.msra.mxu0 0.0
        %739 = vmatprep.subr.mxu0 0.0
        %740 = vmatpush2.msra.mxu0 0.0
        %741 = vmatprep.subr.mxu0 0.0
        %742 = vmatpush2.msra.mxu0 0.0
        %743 = vmatprep.subr.mxu0 0.0
        %744 = vmatpush2.msra.mxu0 0.0
        %745 = vmatprep.subr.mxu0 0.0
        %746 = vmatpush2.msra.mxu0 0.0
        %747 = vmatprep.subr.mxu0 0.0
        %748 = vmatpush2.msra.mxu0 0.0
        %749 = vmatprep.subr.mxu0 0.0
        %750 = vmatpush2.msra.mxu0 0.0
        %751 = vmatprep.subr.mxu0 0.0
        %752 = vmatpush2.msra.mxu0 0.0
        %753 = vmatprep.mubr.f32.mxu0 0.0
        %754 = vmatmul.mubr.f32.gmra.mxu0 %v678
        %v755 = vpop.f32.mrf.mxu0
        %v756 = vadd.f32 %v660, %v755
        %v757 = vpop.f32.mrf.mxu0
        %v758 = vadd.f32 %v660, %v757
        %759 = vmatprep.mubr.f32.mxu0 0.0
        %760 = vmatmul.mubr.f32.gmra.mxu0 %v681
        %v761 = vpop.f32.mrf.mxu0
        %v762 = vadd.f32 %v665, %v761
        %v763 = vpop.f32.mrf.mxu0
        %v764 = vadd.f32 %v665, %v763
        %765 = vmatprep.mubr.f32.mxu0 0.0
        %766 = vmatmul.mubr.f32.gmra.mxu0 %v684
        %v767 = vpop.f32.mrf.mxu0
        %v768 = vadd.f32 %v670, %v767
        %v769 = vpop.f32.mrf.mxu0
        %v770 = vadd.f32 %v670, %v769
        %771 = vmatprep.mubr.f32.mxu0 0.0
        %772 = vmatmul.mubr.f32.gmra.mxu0 %v687
        %v773 = vpop.f32.mrf.mxu0
        %v774 = vadd.f32 %v675, %v773
        %v775 = vpop.f32.mrf.mxu0
        %v776 = vadd.f32 %v675, %v775
        %777 = vdwg.mxu0
        %v778 = vtanh.pop %v756
        %v779 = vtanh.pop %v758
        %v780 = vtanh.pop %v762
        %v781 = vtanh.pop %v764
        %v782 = vxor.u32 %v768, 2147483648
        %v783 = vxor.u32 %v770, 2147483648
        %v784 = vxor.u32 %v774, 2147483648
        %v785 = vxor.u32 %v776, 2147483648
        %v786 = vmul.f32 %v782, 1.442695
        %v787 = vpow.pop %v786
        %v788 = vmul.f32 %v783, 1.442695
        %v789 = vpow.pop %v788
        %v790 = vmul.f32 %v784, 1.442695
        %v791 = vpow.pop %v790
        %v792 = vmul.f32 %v785, 1.442695
        %v793 = vpow.pop %v792
        %v794 = vadd.f32 %v787, 1.0
        %v795 = vadd.f32 %v789, 1.0
        %v796 = vadd.f32 %v791, 1.0
        %v797 = vadd.f32 %v793, 1.0
        %v798 = vrcp.pop %v794
        %v799 = vmul.f32 1.0, %v798
        %v800 = vrcp.pop %v795
        %v801 = vmul.f32 1.0, %v800
        %v802 = vrcp.pop %v796
        %v803 = vmul.f32 1.0, %v802
        %v804 = vrcp.pop %v797
        %v805 = vmul.f32 1.0, %v804
        %v806 = vmul.f32 %v778, %v799
        %v807 = vmul.f32 %v779, %v801
        %v808 = vmul.f32 %v780, %v803
        %v809 = vmul.f32 %v781, %v805
        %811 = vset.pattern.permute.xlu0 0
        %812 = vperm.xlu0 %811, %v617
        %v813 = vpop.permute.xlu0 %812
        %816 = vset.pattern.permute.xlu0 0
        %817 = vperm.xlu0 %816, %v618
        %v818 = vpop.permute.xlu0 %817
        %v821 = vsel %vm519, %v615, 0
        %v824 = vsel %vm519, %v616, 0
        %826 = vmatprep.subr.mxu0 0.0
        %827 = vmatpush1.msra.mxu0 0.0
        %828 = vmatprep.subr.mxu0 0.0
        %829 = vmatpush1.msra.mxu0 0.0
        %830 = vmatprep.subr.mxu0 0.0
        %831 = vmatpush1.msra.mxu0 0.0
        %832 = vmatprep.subr.mxu0 0.0
        %833 = vmatpush1.msra.mxu0 0.0
        %834 = vmatprep.subr.mxu0 0.0
        %835 = vmatpush1.msra.mxu0 0.0
        %836 = vmatprep.subr.mxu0 0.0
        %837 = vmatpush1.msra.mxu0 0.0
        %838 = vmatprep.subr.mxu0 0.0
        %839 = vmatpush1.msra.mxu0 0.0
        %840 = vmatprep.subr.mxu0 0.0
        %841 = vmatpush1.msra.mxu0 0.0
        %842 = vmatprep.subr.mxu0 0.0
        %843 = vmatpush1.msra.mxu0 0.0
        %844 = vmatprep.subr.mxu0 0.0
        %845 = vmatpush1.msra.mxu0 0.0
        %846 = vmatprep.subr.mxu0 0.0
        %847 = vmatpush1.msra.mxu0 0.0
        %848 = vmatprep.subr.mxu0 0.0
        %849 = vmatpush1.msra.mxu0 0.0
        %850 = vmatprep.subr.mxu0 0.0
        %851 = vmatpush1.msra.mxu0 0.0
        %852 = vmatprep.subr.mxu0 0.0
        %853 = vmatpush1.msra.mxu0 0.0
        %854 = vmatprep.subr.mxu0 %v809
        %855 = vmatpush1.msra.mxu0 %v808
        %856 = vmatprep.subr.mxu0 %v807
        %857 = vmatpush1.msra.mxu0 %v806
        %858 = vmatprep.subr.mxu0 0.0
        %859 = vmatpush2.msra.mxu0 0.0
        %860 = vmatprep.subr.mxu0 0.0
        %861 = vmatpush2.msra.mxu0 0.0
        %862 = vmatprep.subr.mxu0 0.0
        %863 = vmatpush2.msra.mxu0 0.0
        %864 = vmatprep.subr.mxu0 0.0
        %865 = vmatpush2.msra.mxu0 0.0
        %866 = vmatprep.subr.mxu0 0.0
        %867 = vmatpush2.msra.mxu0 0.0
        %868 = vmatprep.subr.mxu0 0.0
        %869 = vmatpush2.msra.mxu0 0.0
        %870 = vmatprep.subr.mxu0 0.0
        %871 = vmatpush2.msra.mxu0 0.0
        %872 = vmatprep.subr.mxu0 0.0
        %873 = vmatpush2.msra.mxu0 0.0
        %874 = vmatprep.subr.mxu0 0.0
        %875 = vmatpush2.msra.mxu0 0.0
        %876 = vmatprep.subr.mxu0 0.0
        %877 = vmatpush2.msra.mxu0 0.0
        %878 = vmatprep.subr.mxu0 0.0
        %879 = vmatpush2.msra.mxu0 0.0
        %880 = vmatprep.subr.mxu0 0.0
        %881 = vmatpush2.msra.mxu0 0.0
        %882 = vmatprep.subr.mxu0 0.0
        %883 = vmatpush2.msra.mxu0 0.0
        %884 = vmatprep.subr.mxu0 0.0
        %885 = vmatpush2.msra.mxu0 0.0
        %886 = vmatprep.subr.mxu0 0.0
        %887 = vmatpush2.msra.mxu0 0.0
        %888 = vmatprep.subr.mxu0 0.0
        %889 = vmatpush2.msra.mxu0 0.0
        %890 = vmatprep.mubr.f32.mxu0 0.0
        %891 = vmatmul.mubr.f32.gmra.mxu0 %v821
        %v892 = vpop.f32.mrf.mxu0
        %v893 = vadd.f32 %v813, %v892
        %v894 = vpop.f32.mrf.mxu0
        %v895 = vadd.f32 %v813, %v894
        %896 = vmatprep.mubr.f32.mxu0 0.0
        %897 = vmatmul.mubr.f32.gmra.mxu0 %v824
        %v898 = vpop.f32.mrf.mxu0
        %v899 = vadd.f32 %v818, %v898
        %v900 = vpop.f32.mrf.mxu0
        %v901 = vadd.f32 %v818, %v900
        %902 = vdwg.mxu0
        %v903 = vadd.f32 %v603, %v893
        %v904 = vadd.f32 %v604, %v895
        %v905 = vadd.f32 %v605, %v899
        %v906 = vadd.f32 %v606, %v901
        %v907 = vld [vmem:[%s1 + $0x70] sm:$0xff]
        %v908 = vld [vmem:[%s1 + $0x78] sm:$0xff]
        %v909 = vld [vmem:[%s1 + $0x80] sm:$0xff]
        %v910 = vld [vmem:[%s1 + $0x88] sm:$0xff]
        %v911 = vld [vmem:[%s2 + $0x70] sm:$0xff]
        %v912 = vld [vmem:[%s2 + $0x78] sm:$0xff]
        %v913 = vld [vmem:[%s2 + $0x80] sm:$0xff]
        %v914 = vld [vmem:[%s2 + $0x88] sm:$0xff]
        %v915 = vld [vmem:[%s1 + $0x90] sm:$0xff]
        %v916 = vld [vmem:[%s1 + $0x98] sm:$0xff]
        %v917 = vld [vmem:[%s2 + $0x90] sm:$0xff]
        %v918 = vld [vmem:[%s2 + $0x98] sm:$0xff]
        %vm919 = vcmp.ge.s32.totalorder %v303, 4
        %vm920 = vcmp.ge.s32.totalorder %v304, 4
        %921 = vrot.lane.b32.xlu0 %v893, 4
        %v922 = vpop.permute.xlu0 %921
        %923 = vrot.lane.b32.xlu0 %v899, 4
        %v924 = vpop.permute.xlu0 %923
        %925 = vrot.lane.b32.xlu0 %v895, 4
        %v926 = vpop.permute.xlu0 %925
        %927 = vrot.lane.b32.xlu0 %v901, 4
        %v928 = vpop.permute.xlu0 %927
        %vm929 = vcmp.lt.s32.totalorder %v279, 4
        %v930 = vsel %vm929, %v922, %v926
        %v931 = vsel %vm929, %v924, %v928
        %v932 = vsel %vm929, %v926, %v922
        %v933 = vsel %vm929, %v928, %v924
        %v934 = vsel %vm919, %v932, 0.0
        %v935 = vsel %vm920, %v930, 0.0
        %v936 = vsel %vm919, %v933, 0.0
        %v937 = vsel %vm920, %v931, 0.0
        %vm938 = vcmp.lt.s32.totalorder %v303, 124
        %vm939 = vcmp.lt.s32.totalorder %v304, 124
        %940 = vrot.lane.b32.xlu0 %v893, 124
        %v941 = vpop.permute.xlu0 %940
        %942 = vrot.lane.b32.xlu0 %v899, 124
        %v943 = vpop.permute.xlu0 %942
        %944 = vrot.lane.b32.xlu0 %v895, 124
        %v945 = vpop.permute.xlu0 %944
        %946 = vrot.lane.b32.xlu0 %v901, 124
        %v947 = vpop.permute.xlu0 %946
        %vm948 = vcmp.lt.s32.totalorder %v279, 124
        %v949 = vsel %vm948, %v941, %v945
        %v950 = vsel %vm948, %v943, %v947
        %v951 = vsel %vm948, %v945, %v941
        %v952 = vsel %vm948, %v947, %v943
        %v953 = vsel %vm938, %v949, 0.0
        %v954 = vsel %vm939, %v951, 0.0
        %v955 = vsel %vm938, %v950, 0.0
        %v956 = vsel %vm939, %v952, 0.0
        %958 = vset.pattern.permute.xlu0 0
        %959 = vperm.xlu0 %958, %v911
        %v960 = vpop.permute.xlu0 %959
        %963 = vset.pattern.permute.xlu0 0
        %964 = vperm.xlu0 %963, %v912
        %v965 = vpop.permute.xlu0 %964
        %968 = vset.pattern.permute.xlu0 0
        %969 = vperm.xlu0 %968, %v913
        %v970 = vpop.permute.xlu0 %969
        %973 = vset.pattern.permute.xlu0 0
        %974 = vperm.xlu0 %973, %v914
        %v975 = vpop.permute.xlu0 %974
        %v978 = vsel %vm375, %v907, 0
        %v981 = vsel %vm375, %v908, 0
        %v984 = vsel %vm375, %v909, 0
        %v987 = vsel %vm375, %v910, 0
        %989 = vmatprep.subr.mxu0 0.0
        %990 = vmatpush1.msra.mxu0 0.0
        %991 = vmatprep.subr.mxu0 0.0
        %992 = vmatpush1.msra.mxu0 0.0
        %993 = vmatprep.subr.mxu0 0.0
        %994 = vmatpush1.msra.mxu0 0.0
        %995 = vmatprep.subr.mxu0 0.0
        %996 = vmatpush1.msra.mxu0 0.0
        %997 = vmatprep.subr.mxu0 0.0
        %998 = vmatpush1.msra.mxu0 0.0
        %999 = vmatprep.subr.mxu0 0.0
        %1000 = vmatpush1.msra.mxu0 0.0
        %1001 = vmatprep.subr.mxu0 0.0
        %1002 = vmatpush1.msra.mxu0 0.0
        %1003 = vmatprep.subr.mxu0 0.0
        %1004 = vmatpush1.msra.mxu0 0.0
        %1005 = vmatprep.subr.mxu0 0.0
        %1006 = vmatpush1.msra.mxu0 0.0
        %1007 = vmatprep.subr.mxu0 0.0
        %1008 = vmatpush1.msra.mxu0 0.0
        %1009 = vmatprep.subr.mxu0 %v956
        %1010 = vmatpush1.msra.mxu0 %v955
        %1011 = vmatprep.subr.mxu0 %v954
        %1012 = vmatpush1.msra.mxu0 %v953
        %1013 = vmatprep.subr.mxu0 %v901
        %1014 = vmatpush1.msra.mxu0 %v899
        %1015 = vmatprep.subr.mxu0 %v895
        %1016 = vmatpush1.msra.mxu0 %v893
        %1017 = vmatprep.subr.mxu0 %v937
        %1018 = vmatpush1.msra.mxu0 %v936
        %1019 = vmatprep.subr.mxu0 %v935
        %1020 = vmatpush1.msra.mxu0 %v934
        %1021 = vmatprep.subr.mxu0 0.0
        %1022 = vmatpush2.msra.mxu0 0.0
        %1023 = vmatprep.subr.mxu0 0.0
        %1024 = vmatpush2.msra.mxu0 0.0
        %1025 = vmatprep.subr.mxu0 0.0
        %1026 = vmatpush2.msra.mxu0 0.0
        %1027 = vmatprep.subr.mxu0 0.0
        %1028 = vmatpush2.msra.mxu0 0.0
        %1029 = vmatprep.subr.mxu0 0.0
        %1030 = vmatpush2.msra.mxu0 0.0
        %1031 = vmatprep.subr.mxu0 0.0
        %1032 = vmatpush2.msra.mxu0 0.0
        %1033 = vmatprep.subr.mxu0 0.0
        %1034 = vmatpush2.msra.mxu0 0.0
        %1035 = vmatprep.subr.mxu0 0.0
        %1036 = vmatpush2.msra.mxu0 0.0
        %1037 = vmatprep.subr.mxu0 0.0
        %1038 = vmatpush2.msra.mxu0 0.0
        %1039 = vmatprep.subr.mxu0 0.0
        %1040 = vmatpush2.msra.mxu0 0.0
        %1041 = vmatprep.subr.mxu0 0.0
        %1042 = vmatpush2.msra.mxu0 0.0
        %1043 = vmatprep.subr.mxu0 0.0
        %1044 = vmatpush2.msra.mxu0 0.0
        %1045 = vmatprep.subr.mxu0 0.0
        %1046 = vmatpush2.msra.mxu0 0.0
        %1047 = vmatprep.subr.mxu0 0.0
        %1048 = vmatpush2.msra.mxu0 0.0
        %1049 = vmatprep.subr.mxu0 0.0
        %1050 = vmatpush2.msra.mxu0 0.0
        %1051 = vmatprep.subr.mxu0 0.0
        %1052 = vmatpush2.msra.mxu0 0.0
        %1053 = vmatprep.mubr.f32.mxu0 0.0
        %1054 = vmatmul.mubr.f32.gmra.mxu0 %v978
        %v1055 = vpop.f32.mrf.mxu0
        %v1056 = vadd.f32 %v960, %v1055
        %v1057 = vpop.f32.mrf.mxu0
        %v1058 = vadd.f32 %v960, %v1057
        %1059 = vmatprep.mubr.f32.mxu0 0.0
        %1060 = vmatmul.mubr.f32.gmra.mxu0 %v981
        %v1061 = vpop.f32.mrf.mxu0
        %v1062 = vadd.f32 %v965, %v1061
        %v1063 = vpop.f32.mrf.mxu0
        %v1064 = vadd.f32 %v965, %v1063
        %1065 = vmatprep.mubr.f32.mxu0 0.0
        %1066 = vmatmul.mubr.f32.gmra.mxu0 %v984
        %v1067 = vpop.f32.mrf.mxu0
        %v1068 = vadd.f32 %v970, %v1067
        %v1069 = vpop.f32.mrf.mxu0
        %v1070 = vadd.f32 %v970, %v1069
        %1071 = vmatprep.mubr.f32.mxu0 0.0
        %1072 = vmatmul.mubr.f32.gmra.mxu0 %v987
        %v1073 = vpop.f32.mrf.mxu0
        %v1074 = vadd.f32 %v975, %v1073
        %v1075 = vpop.f32.mrf.mxu0
        %v1076 = vadd.f32 %v975, %v1075
        %1077 = vdwg.mxu0
        %v1078 = vtanh.pop %v1056
        %v1079 = vtanh.pop %v1058
        %v1080 = vtanh.pop %v1062
        %v1081 = vtanh.pop %v1064
        %v1082 = vxor.u32 %v1068, 2147483648
        %v1083 = vxor.u32 %v1070, 2147483648
        %v1084 = vxor.u32 %v1074, 2147483648
        %v1085 = vxor.u32 %v1076, 2147483648
        %v1086 = vmul.f32 %v1082, 1.442695
        %v1087 = vpow.pop %v1086
        %v1088 = vmul.f32 %v1083, 1.442695
        %v1089 = vpow.pop %v1088
        %v1090 = vmul.f32 %v1084, 1.442695
        %v1091 = vpow.pop %v1090
        %v1092 = vmul.f32 %v1085, 1.442695
        %v1093 = vpow.pop %v1092
        %v1094 = vadd.f32 %v1087, 1.0
        %v1095 = vadd.f32 %v1089, 1.0
        %v1096 = vadd.f32 %v1091, 1.0
        %v1097 = vadd.f32 %v1093, 1.0
        %v1098 = vrcp.pop %v1094
        %v1099 = vmul.f32 1.0, %v1098
        %v1100 = vrcp.pop %v1095
        %v1101 = vmul.f32 1.0, %v1100
        %v1102 = vrcp.pop %v1096
        %v1103 = vmul.f32 1.0, %v1102
        %v1104 = vrcp.pop %v1097
        %v1105 = vmul.f32 1.0, %v1104
        %v1106 = vmul.f32 %v1078, %v1099
        %v1107 = vmul.f32 %v1079, %v1101
        %v1108 = vmul.f32 %v1080, %v1103
        %v1109 = vmul.f32 %v1081, %v1105
        %1111 = vset.pattern.permute.xlu0 0
        %1112 = vperm.xlu0 %1111, %v917
        %v1113 = vpop.permute.xlu0 %1112
        %1116 = vset.pattern.permute.xlu0 0
        %1117 = vperm.xlu0 %1116, %v918
        %v1118 = vpop.permute.xlu0 %1117
        %v1121 = vsel %vm519, %v915, 0
        %v1124 = vsel %vm519, %v916, 0
        %1126 = vmatprep.subr.mxu0 0.0
        %1127 = vmatpush1.msra.mxu0 0.0
        %1128 = vmatprep.subr.mxu0 0.0
        %1129 = vmatpush1.msra.mxu0 0.0
        %1130 = vmatprep.subr.mxu0 0.0
        %1131 = vmatpush1.msra.mxu0 0.0
        %1132 = vmatprep.subr.mxu0 0.0
        %1133 = vmatpush1.msra.mxu0 0.0
        %1134 = vmatprep.subr.mxu0 0.0
        %1135 = vmatpush1.msra.mxu0 0.0
        %1136 = vmatprep.subr.mxu0 0.0
        %1137 = vmatpush1.msra.mxu0 0.0
        %1138 = vmatprep.subr.mxu0 0.0
        %1139 = vmatpush1.msra.mxu0 0.0
        %1140 = vmatprep.subr.mxu0 0.0
        %1141 = vmatpush1.msra.mxu0 0.0
        %1142 = vmatprep.subr.mxu0 0.0
        %1143 = vmatpush1.msra.mxu0 0.0
        %1144 = vmatprep.subr.mxu0 0.0
        %1145 = vmatpush1.msra.mxu0 0.0
        %1146 = vmatprep.subr.mxu0 0.0
        %1147 = vmatpush1.msra.mxu0 0.0
        %1148 = vmatprep.subr.mxu0 0.0
        %1149 = vmatpush1.msra.mxu0 0.0
        %1150 = vmatprep.subr.mxu0 0.0
        %1151 = vmatpush1.msra.mxu0 0.0
        %1152 = vmatprep.subr.mxu0 0.0
        %1153 = vmatpush1.msra.mxu0 0.0
        %1154 = vmatprep.subr.mxu0 %v1109
        %1155 = vmatpush1.msra.mxu0 %v1108
        %1156 = vmatprep.subr.mxu0 %v1107
        %1157 = vmatpush1.msra.mxu0 %v1106
        %1158 = vmatprep.subr.mxu0 0.0
        %1159 = vmatpush2.msra.mxu0 0.0
        %1160 = vmatprep.subr.mxu0 0.0
        %1161 = vmatpush2.msra.mxu0 0.0
        %1162 = vmatprep.subr.mxu0 0.0
        %1163 = vmatpush2.msra.mxu0 0.0
        %1164 = vmatprep.subr.mxu0 0.0
        %1165 = vmatpush2.msra.mxu0 0.0
        %1166 = vmatprep.subr.mxu0 0.0
        %1167 = vmatpush2.msra.mxu0 0.0
        %1168 = vmatprep.subr.mxu0 0.0
        %1169 = vmatpush2.msra.mxu0 0.0
        %1170 = vmatprep.subr.mxu0 0.0
        %1171 = vmatpush2.msra.mxu0 0.0
        %1172 = vmatprep.subr.mxu0 0.0
        %1173 = vmatpush2.msra.mxu0 0.0
        %1174 = vmatprep.subr.mxu0 0.0
        %1175 = vmatpush2.msra.mxu0 0.0
        %1176 = vmatprep.subr.mxu0 0.0
        %1177 = vmatpush2.msra.mxu0 0.0
        %1178 = vmatprep.subr.mxu0 0.0
        %1179 = vmatpush2.msra.mxu0 0.0
        %1180 = vmatprep.subr.mxu0 0.0
        %1181 = vmatpush2.msra.mxu0 0.0
        %1182 = vmatprep.subr.mxu0 0.0
        %1183 = vmatpush2.msra.mxu0 0.0
        %1184 = vmatprep.subr.mxu0 0.0
        %1185 = vmatpush2.msra.mxu0 0.0
        %1186 = vmatprep.subr.mxu0 0.0
        %1187 = vmatpush2.msra.mxu0 0.0
        %1188 = vmatprep.subr.mxu0 0.0
        %1189 = vmatpush2.msra.mxu0 0.0
        %1190 = vmatprep.mubr.f32.mxu0 0.0
        %1191 = vmatmul.mubr.f32.gmra.mxu0 %v1121
        %v1192 = vpop.f32.mrf.mxu0
        %v1193 = vadd.f32 %v1113, %v1192
        %v1194 = vpop.f32.mrf.mxu0
        %v1195 = vadd.f32 %v1113, %v1194
        %1196 = vmatprep.mubr.f32.mxu0 0.0
        %1197 = vmatmul.mubr.f32.gmra.mxu0 %v1124
        %v1198 = vpop.f32.mrf.mxu0
        %v1199 = vadd.f32 %v1118, %v1198
        %v1200 = vpop.f32.mrf.mxu0
        %v1201 = vadd.f32 %v1118, %v1200
        %1202 = vdwg.mxu0
        %v1203 = vadd.f32 %v903, %v1193
        %v1204 = vadd.f32 %v904, %v1195
        %v1205 = vadd.f32 %v905, %v1199
        %v1206 = vadd.f32 %v906, %v1201
        %1207 = vst [vmem:[%s164] sm:$0xff] %v1203
        %1208 = vst [vmem:[%s164 + $0x8] sm:$0xff] %v1204
        %1209 = vst [vmem:[%s164 + $0x10] sm:$0xff] %v1205
        %1210 = vst [vmem:[%s164 + $0x18] sm:$0xff] %v1206
        %s1211 = sand.u32 %s93, 1
        %s1212 = scalar_lea.sflag [#allocation3], %s1211
        %s1213 = sand.u32 %s93, 1
        %s1214 = smul.addr %s1213, 32
        %s1215 = scalar_lea.vmem [#allocation2], %s1214
        // Predicated region
        $region33: #{tpu_custom_call.1} parent=31 // pred_check
          %p1216 = pneg %p103
        $region34: #{tpu_custom_call.1} parent=31 // pred_check_branch
          %1218 = sbr.rel (%p1216) target = $region36
        $region35: #{tpu_custom_call.1} parent=31 // pred_region
          %s1219 = smul.u32 2, %s17
          %s1221 = ssub.s32 512, 512
          %1222 = vsyncadd %s1212, %s1221
          %s1223 = smul.addr %s1219, 128
          %s1224 = scalar_lea.hbm %s3, %s1223
          %s1225 = sshll.u32 %s1215, 4
          %s1226 = int_to_ptr.vmem [resolvable:$true] %s1225
          %1231 = dma.vmem_to_hbm [thread:$0]  %s1226, 512, %s1224, %s1212, 256, 512, 16
        $region36: #{tpu_custom_call.1} parent=31 // pred_fallthru
          _
      $region32: #{tpu_custom_call.1} parent=5 // pred_fallthru
        _
      %p1232 = scmp.le.s32.totalorder 2, %s12
      // Predicated region
      $region37: #{tpu_custom_call.1} parent=5 // pred_check
        %p1233 = pneg %p1232
      $region38: #{tpu_custom_call.1} parent=5 // pred_check_branch
        %1235 = sbr.rel (%p1233) target = $region40
      $region39: #{tpu_custom_call.1} parent=5 // pred_region
        %s1236 = ssub.s32 %s12, 2
        // Predicated region
        $region41: #{tpu_custom_call.1} parent=39 // pred_check
          %p1237 = pneg %p109
        $region42: #{tpu_custom_call.1} parent=39 // pred_check_branch
          %1239 = sbr.rel (%p1237) target = $region44
        $region43: #{tpu_custom_call.1} parent=39 // pred_region
          %s1240 = sand.u32 %s94, 1
          %s1241 = scalar_lea.sflag [#allocation3], %s1240
          %s1242 = sand.u32 %s94, 1
          %s1243 = smul.addr %s1242, 32
          %s1244 = scalar_lea.vmem [#allocation2], %s1243
          %1245 = dma.done %s1241, 512
        $region44: #{tpu_custom_call.1} parent=39 // pred_fallthru
          _
      $region40: #{tpu_custom_call.1} parent=5 // pred_fallthru
        _
    $region6: #{tpu_custom_call.1} parent=1 // loop_footer
      %s16 = sadd.s32 1, %s12
    $region7: #{tpu_custom_call.1} parent=1 // loop_footer_branch
      %11 = sbr.rel target = $region3
    $region8: #{tpu_custom_call.1} parent=1 // loop_exit
      _
    %1246 = vsyncpa [#allocation3], 1
    %s1247 = scalar_lea.sflag [#allocation3], 1
    %1248 = vsyncpa %s1247, 1

</llo_original>
